<compile_context>
chip_gen: v6e
topology: v6e:2x2x1
jax: 0.10.0
libtpu: 0.0.40
codegen_flags: <defaults>
</compile_context>

<pallas_src>
import functools
import math

import jax
import jax.numpy as jnp
from jax.experimental import pallas as pl
from jax.experimental.pallas import tpu as pltpu


def _round_up(x: int, m: int) -> int:
    return ((x + m - 1) // m) * m


def _pick_chain_tile(total: int, candidates=(512, 256, 128)) -> int:
    """Largest candidate dividing `total`, preferring ones leaving >= 2 tiles
    (keeps the 'parallel' chain axis splittable across v7x's two TensorCores)."""
    divisors = [t for t in candidates if total % t == 0]
    multi = [t for t in divisors if total // t >= 2]
    return max(multi) if multi else max(divisors)


# ----------------------------------------------------------------------------
# Pallas kernel: rectification matrix (transposed, cached) + linear transform.
# ----------------------------------------------------------------------------
def _resonator_kernel(fin_ref, p_ref, f0_ref, w_ref, conn_ref, b_ref,
                      o_ref, wt_ref, res_sc, num_sc, den_sc,
                      *, damping, ksd, n_k, n_rows, tc, unroll):
    # fin_ref : VMEM (N8, 1)    input frequencies f_i^in (padded column)
    # p_ref   : VMEM (tb, N8)   input powers tile
    # f0_ref  : VMEM (N8, 1)    initial resonance frequencies (column)
    # w_ref   : VMEM (N8, tc)   learnable frequency shifts, resonator-major
    # conn_ref: VMEM (N8, 1)    (-1)^(k+1) connection signs (column, 0 in pad)
    # b_ref   : VMEM (1, tc)    bias voltages tile
    # o_ref   : VMEM (tb, tc)   output voltages tile
    # wt_ref  : VMEM (N8, tc)   scratch: cached W^T for the current chain tile
    # res_sc / num_sc / den_sc : VMEM (N8, tc) staged i-invariant factors

    # Build W^T once per chain tile (first batch step); reuse for all batches.
    # Valid only while the batch axis is the innermost, "arbitrary" grid axis.
    @pl.when(pl.program_id(1) == 0)
    def _build_rectification():
        res = f0_ref[...] + w_ref[...]                            # (N8, tc)
        # i-invariant factors, staged in VMEM (bounded vreg pressure at big N).
        res_sc[...] = res
        num_sc[...] = (2.0 * damping * ksd) * res * conn_ref[...]
        den_sc[...] = (damping * res) ** 2
        # Lane-broadcast of the f_in column, hoisted out of the k loop.
        fin_b = jnp.broadcast_to(fin_ref[...], (n_rows, tc))      # (N8, tc)

        def body(k, acc):
            # Row k of the per-resonator factors, broadcast over all inputs i.
            r = res_sc[pl.ds(k, 1), :]                            # (1, tc)
            nu = num_sc[pl.ds(k, 1), :]
            de = den_sc[pl.ds(k, 1), :]
            diff = fin_b - r                                      # (N8, tc)
            d = de + diff * diff
            inv = pl.reciprocal(d, approx=True)                   # EUP slot
            inv = inv * (2.0 - d * inv)                           # 1 Newton step
            return acc + nu * diff * inv                          # pure VALU

        acc0 = jnp.zeros((n_rows, tc), jnp.float32)
        # Single dense store of the whole W^T tile (no per-row masked stores).
        wt_ref[...] = jax.lax.fori_loop(0, n_k, body, acc0, unroll=unroll)

    # V = P @ W^T + b  -- W^T is already (N8, tc): straight MXU, no transpose.
    out = jnp.dot(p_ref[...], wt_ref[...], preferred_element_type=jnp.float32)
    o_ref[...] = (out + b_ref[...]).astype(o_ref.dtype)


def layer_chains_resonators_forward(input_powers, input_freq, initial_res_freq,
                                    weight, connection, bias, *, damping, ksd):
    B, N = input_powers.shape
    C = weight.shape[0]

    # ---- lane/sublane-dense padded sizes & tiles --------------------------
    N8 = _round_up(max(N, 8), 8)            # resonator / input axis -> sublanes
    C_pad = _round_up(max(C, 128), 128)     # chain axis -> lanes (output)
    B_pad = _round_up(max(B, 8), 8)
    tc = _pick_chain_tile(C_pad)            # up to 512; keeps n_c >= 2 if possible
    if B_pad <= 512:
        tb = B_pad
    else:
        tb = 512
        B_pad = _round_up(B, tb)
    n_c, n_b = C_pad // tc, B_pad // tb

    f32 = jnp.float32
    # Zero-pad P (padded i columns contribute nothing to the contraction).
    p_pad = jnp.zeros((B_pad, N8), f32).at[:B, :N].set(input_powers.astype(f32))
    fin_pad = jnp.zeros((N8, 1), f32).at[:N, 0].set(input_freq.astype(f32))
    # Pad initial resonance freqs with 1.0 so padded denominators stay > 0,
    # and pad the connection signs with 0.0 so padded resonators contribute 0.
    f0_pad = jnp.ones((N8, 1), f32).at[:N, 0].set(initial_res_freq.astype(f32))
    conn_pad = jnp.zeros((N8, 1), f32).at[:N, 0].set(connection.astype(f32))
    w_t_pad = jnp.zeros((N8, C_pad), f32).at[:N, :C].set(weight.astype(f32).T)
    b_pad = jnp.zeros((1, C_pad), f32).at[0, :C].set(bias.astype(f32))

    kernel = functools.partial(
        _resonator_kernel, damping=float(damping), ksd=float(ksd),
        n_k=N, n_rows=N8, tc=tc, unroll=(True if N <= 16 else 8))

    cost = pl.CostEstimate(
        flops=(9 * N * N8 + 2 * B_pad * N8) * C_pad,
        transcendentals=N * N8 * C_pad,
        bytes_accessed=4 * (B_pad * N8 + N8 * C_pad + B_pad * C_pad
                            + 3 * N8 + C_pad))

    # Per-step VMEM footprint (double-buffered pipelined operands + scratch);
    # request headroom but stay within v7x's 64 MiB physical VMEM.
    per_step_bytes = 4 * (2 * tb * N8 + 2 * N8 * tc + 2 * tb * tc
                          + 4 * N8 * tc + 6 * N8 + 2 * tc)
    vmem_limit = int(min(64 * 1024 * 1024,
                         max(32 * 1024 * 1024, 2 * per_step_bytes)))

    out_padded = pl.pallas_call(
        kernel,
        out_shape=jax.ShapeDtypeStruct((B_pad, C_pad), f32),
        grid=(n_c, n_b),
        in_specs=[
            pl.BlockSpec((N8, 1), lambda c, b: (0, 0)),          # input freqs
            pl.BlockSpec((tb, N8), lambda c, b: (b, 0)),         # input powers
            pl.BlockSpec((N8, 1), lambda c, b: (0, 0)),          # f0 column
            pl.BlockSpec((N8, tc), lambda c, b: (0, c)),         # weight^T tile
            pl.BlockSpec((N8, 1), lambda c, b: (0, 0)),          # connection
            pl.BlockSpec((1, tc), lambda c, b: (0, c)),          # bias tile
        ],
        out_specs=pl.BlockSpec((tb, tc), lambda c, b: (b, c)),
        scratch_shapes=[pltpu.VMEM((N8, tc), f32),               # cached W^T
                        pltpu.VMEM((N8, tc), f32),               # res
                        pltpu.VMEM((N8, tc), f32),               # numer
                        pltpu.VMEM((N8, tc), f32)],              # denom0
        compiler_params=pltpu.CompilerParams(
            dimension_semantics=("parallel", "arbitrary"),
            vmem_limit_bytes=vmem_limit),
        cost_estimate=cost,
    )(fin_pad, p_pad, f0_pad, w_t_pad, conn_pad, b_pad)

    return out_padded[:B, :C]


# ----------------------------------------------------------------------------
# Deterministic parameter construction (mirrors __init__ / reset_parameters).
# ----------------------------------------------------------------------------
def freq_distribution(kind, n, minimum, maximum):
    # TODO(synk): `freq_distribution` is defined outside the provided module;
    # using a deterministic monotone spacing between the given bounds here.
    if kind == "linear":
        return jnp.linspace(minimum, maximum, n, dtype=jnp.float32)
    t = jnp.linspace(0.0, 1.0, n, dtype=jnp.float32)
    return (minimum + (maximum - minimum) * t ** 2).astype(jnp.float32)


def build_params(key, nb_resonators_per_chain, nb_chains,
                 freq_res_bounds=(1.0, 10.0), signed_connection="k+1",
                 Ith_res=10.0, freq_res_distrib="non_linear",
                 weight_scaling=0.001, bias_scaling=0.01, damping=0.01):
    k_w, k_b = jax.random.split(key)
    n, c = nb_resonators_per_chain, nb_chains

    initial_res_freq = freq_distribution(freq_res_distrib, n,
                                         freq_res_bounds[0], freq_res_bounds[1])
    input_freq = initial_res_freq  # default: same distribution as resonance freqs

    if signed_connection == "k":
        conn = jnp.array([(-1.0) ** k for k in range(n)], dtype=jnp.float32)
    else:  # 'k+1'
        conn = jnp.array([(-1.0) ** (k + 1) for k in range(n)], dtype=jnp.float32)

    w_std = (1.0 / math.sqrt(n)) * weight_scaling
    b_std = (1.0 / math.sqrt(c)) * bias_scaling
    weight = w_std * jax.random.normal(k_w, (c, n), dtype=jnp.float32)
    bias = b_std * jax.random.normal(k_b, (c,), dtype=jnp.float32)

    ksd = math.tan(math.pi / 4.0) / (8.0 * math.sqrt(2.0)) / Ith_res

    return dict(input_freq=input_freq, initial_res_freq=initial_res_freq,
                weight=weight, connection=conn, bias=bias,
                damping=damping, ksd=ksd)


# Pure-JAX reference (same math as the torch module), used for a sanity check.
def reference_forward(p, params):
    fin = params["input_freq"].reshape(1, -1, 1)
    fres = (params["initial_res_freq"] + params["weight"])[:, None, :]
    diff = fin - fres
    g = (2.0 * params["damping"] * fres * diff
         / ((params["damping"] * fres) ** 2 + diff ** 2)
         * params["ksd"] * params["connection"][None, None, :])
    w = jnp.sum(g, axis=2)
    return p @ w.T + params["bias"][None, :]


if __name__ == "__main__":
    nb_resonators_per_chain = 8   # == number of input frequencies
    nb_chains = 4                 # number of output chains
    batch = 2

    key = jax.random.PRNGKey(0)
    k_params, k_input = jax.random.split(key)
    params = build_params(k_params, nb_resonators_per_chain, nb_chains,
                          freq_res_bounds=(1.0, 10.0))

    # Input powers in [0, 1] (1 unit = 1 uW).
    input_powers = jax.random.uniform(k_input, (batch, nb_resonators_per_chain),
                                      dtype=jnp.float32)

    out = layer_chains_resonators_forward(
        input_powers,
        params["input_freq"], params["initial_res_freq"],
        params["weight"], params["connection"], params["bias"],
        damping=params["damping"], ksd=params["ksd"])
    out = jax.block_until_ready(out)

    ref = jax.block_until_ready(reference_forward(input_powers, params))
    assert out.shape == (batch, nb_chains)
    # Tolerance covers the EUP approx-reciprocal + single Newton refinement.
    assert jnp.allclose(out, ref, rtol=1e-3, atol=1e-6), (out, ref)

    print("KERNEL_OK")
</pallas_src>

<mosaic_0001>
module attributes {stable_mosaic.version = 11 : i64} {
  func.func @_resonator_kernel(%arg0: i32, %arg1: i32, %arg2: memref<8x1xf32, #tpu.memory_space<vmem>>, %arg3: memref<8x8xf32, #tpu.memory_space<vmem>>, %arg4: memref<8x1xf32, #tpu.memory_space<vmem>>, %arg5: memref<8x128xf32, #tpu.memory_space<vmem>>, %arg6: memref<8x1xf32, #tpu.memory_space<vmem>>, %arg7: memref<1x128xf32, #tpu.memory_space<vmem>>, %arg8: memref<8x128xf32, #tpu.memory_space<vmem>>, %arg9: memref<8x128xf32, #tpu.memory_space<vmem>>, %arg10: memref<8x128xf32, #tpu.memory_space<vmem>>, %arg11: memref<8x128xf32, #tpu.memory_space<vmem>>, %arg12: memref<8x128xf32, #tpu.memory_space<vmem>>) attributes {dimension_semantics = [#tpu.dimension_semantics<parallel>, #tpu.dimension_semantics<arbitrary>], iteration_bounds = array<i64: 1, 1>, scalar_prefetch = 0 : i64, scratch_operands = 4 : i64, tpu.core_type = #tpu.core_type<tc>, window_params = [{pipeline_mode = #tpu.pipeline_mode<synchronous>, transform_indices = @transform_0, window_bounds = array<i64: 8, 1>}, {transform_indices = @transform_1, window_bounds = array<i64: 8, 8>}, {pipeline_mode = #tpu.pipeline_mode<synchronous>, transform_indices = @transform_2, window_bounds = array<i64: 8, 1>}, {transform_indices = @transform_3, window_bounds = array<i64: 8, 128>}, {pipeline_mode = #tpu.pipeline_mode<synchronous>, transform_indices = @transform_4, window_bounds = array<i64: 8, 1>}, {transform_indices = @transform_5, window_bounds = array<i64: 1, 128>}, {transform_indices = @transform_6, window_bounds = array<i64: 8, 128>}]} {
    %c0_i32 = arith.constant 0 : i32
    %0 = arith.cmpi eq, %arg1, %c0_i32 : i32
    %1 = arith.extui %0 : i1 to i32
    %c0_i32_0 = arith.constant 0 : i32
    %2 = arith.cmpi ne, %1, %c0_i32_0 : i32
    scf.if %2 {
      %c0_8 = arith.constant 0 : index
      %c0_9 = arith.constant 0 : index
      %10 = vector.load %arg4[%c0_8, %c0_9] : memref<8x1xf32, #tpu.memory_space<vmem>>, vector<8x1xf32>
      %c0_10 = arith.constant 0 : index
      %c0_11 = arith.constant 0 : index
      %11 = vector.load %arg5[%c0_10, %c0_11] : memref<8x128xf32, #tpu.memory_space<vmem>>, vector<8x128xf32>
      %12 = vector.broadcast %10 : vector<8x1xf32> to vector<8x128xf32>
      %13 = arith.addf %12, %11 : vector<8x128xf32>
      %c0_12 = arith.constant 0 : index
      %c0_13 = arith.constant 0 : index
      %14 = vector.load %arg10[%c0_12, %c0_13] : memref<8x128xf32, #tpu.memory_space<vmem>>, vector<8x128xf32>
      tpu.vector_store %arg10[%c0_12, %c0_13], %13 {strides = array<i32>} : memref<8x128xf32, #tpu.memory_space<vmem>>, vector<8x128xf32>,
      %cst_14 = arith.constant 1.76776695E-4 : f32
      %15 = vector.broadcast %cst_14 : f32 to vector<8x128xf32>
      %16 = arith.mulf %15, %13 : vector<8x128xf32>
      %c0_15 = arith.constant 0 : index
      %c0_16 = arith.constant 0 : index
      %17 = vector.load %arg6[%c0_15, %c0_16] : memref<8x1xf32, #tpu.memory_space<vmem>>, vector<8x1xf32>
      %18 = vector.broadcast %17 : vector<8x1xf32> to vector<8x128xf32>
      %19 = arith.mulf %16, %18 : vector<8x128xf32>
      %c0_17 = arith.constant 0 : index
      %c0_18 = arith.constant 0 : index
      %20 = vector.load %arg11[%c0_17, %c0_18] : memref<8x128xf32, #tpu.memory_space<vmem>>, vector<8x128xf32>
      tpu.vector_store %arg11[%c0_17, %c0_18], %19 {strides = array<i32>} : memref<8x128xf32, #tpu.memory_space<vmem>>, vector<8x128xf32>,
      %cst_19 = arith.constant 0.00999999977 : f32
      %21 = vector.broadcast %cst_19 : f32 to vector<8x128xf32>
      %22 = arith.mulf %21, %13 : vector<8x128xf32>
      %23 = arith.mulf %22, %22 : vector<8x128xf32>
      %c0_20 = arith.constant 0 : index
      %c0_21 = arith.constant 0 : index
      %24 = vector.load %arg12[%c0_20, %c0_21] : memref<8x128xf32, #tpu.memory_space<vmem>>, vector<8x128xf32>
      tpu.vector_store %arg12[%c0_20, %c0_21], %23 {strides = array<i32>} : memref<8x128xf32, #tpu.memory_space<vmem>>, vector<8x128xf32>,
      %c0_22 = arith.constant 0 : index
      %c0_23 = arith.constant 0 : index
      %25 = vector.load %arg2[%c0_22, %c0_23] : memref<8x1xf32, #tpu.memory_space<vmem>>, vector<8x1xf32>
      %26 = vector.shape_cast %25 : vector<8x1xf32> to vector<8x1xf32>
      %27 = vector.broadcast %26 : vector<8x1xf32> to vector<8x128xf32>
      %cst_24 = arith.constant 0.000000e+00 : f32
      %28 = vector.broadcast %cst_24 : f32 to vector<8x128xf32>
      %c0_i32_25 = arith.constant 0 : i32
      %29 = arith.index_cast %c0_i32_25 : i32 to index
      %c0_26 = arith.constant 0 : index
      %30 = vector.load %arg10[%29, %c0_26] : memref<8x128xf32, #tpu.memory_space<vmem>>, vector<1x128xf32>
      %31 = arith.index_cast %c0_i32_25 : i32 to index
      %c0_27 = arith.constant 0 : index
      %32 = vector.load %arg11[%31, %c0_27] : memref<8x128xf32, #tpu.memory_space<vmem>>, vector<1x128xf32>
      %33 = arith.index_cast %c0_i32_25 : i32 to index
      %c0_28 = arith.constant 0 : index
      %34 = vector.load %arg12[%33, %c0_28] : memref<8x128xf32, #tpu.memory_space<vmem>>, vector<1x128xf32>
      %35 = vector.broadcast %30 : vector<1x128xf32> to vector<8x128xf32>
      %36 = arith.subf %27, %35 : vector<8x128xf32>
      %37 = arith.mulf %36, %36 : vector<8x128xf32>
      %38 = vector.broadcast %34 : vector<1x128xf32> to vector<8x128xf32>
      %39 = arith.addf %38, %37 : vector<8x128xf32>
      %40 = tpu.reciprocal %39 {approx = true} : vector<8x128xf32> -> vector<8x128xf32>
      %41 = arith.mulf %39, %40 : vector<8x128xf32>
      %cst_29 = arith.constant 2.000000e+00 : f32
      %42 = vector.broadcast %cst_29 : f32 to vector<8x128xf32>
      %43 = arith.subf %42, %41 : vector<8x128xf32>
      %44 = arith.mulf %40, %43 : vector<8x128xf32>
      %45 = vector.broadcast %32 : vector<1x128xf32> to vector<8x128xf32>
      %46 = arith.mulf %45, %36 : vector<8x128xf32>
      %47 = arith.mulf %46, %44 : vector<8x128xf32>
      %48 = arith.addf %28, %47 : vector<8x128xf32>
      %c1_i32 = arith.constant 1 : i32
      %49 = arith.index_cast %c1_i32 : i32 to index
      %c0_30 = arith.constant 0 : index
      %50 = vector.load %arg10[%49, %c0_30] : memref<8x128xf32, #tpu.memory_space<vmem>>, vector<1x128xf32>
      %51 = arith.index_cast %c1_i32 : i32 to index
      %c0_31 = arith.constant 0 : index
      %52 = vector.load %arg11[%51, %c0_31] : memref<8x128xf32, #tpu.memory_space<vmem>>, vector<1x128xf32>
      %53 = arith.index_cast %c1_i32 : i32 to index
      %c0_32 = arith.constant 0 : index
      %54 = vector.load %arg12[%53, %c0_32] : memref<8x128xf32, #tpu.memory_space<vmem>>, vector<1x128xf32>
      %55 = vector.broadcast %50 : vector<1x128xf32> to vector<8x128xf32>
      %56 = arith.subf %27, %55 : vector<8x128xf32>
      %57 = arith.mulf %56, %56 : vector<8x128xf32>
      %58 = vector.broadcast %54 : vector<1x128xf32> to vector<8x128xf32>
      %59 = arith.addf %58, %57 : vector<8x128xf32>
      %60 = tpu.reciprocal %59 {approx = true} : vector<8x128xf32> -> vector<8x128xf32>
      %61 = arith.mulf %59, %60 : vector<8x128xf32>
      %cst_33 = arith.constant 2.000000e+00 : f32
      %62 = vector.broadcast %cst_33 : f32 to vector<8x128xf32>
      %63 = arith.subf %62, %61 : vector<8x128xf32>
      %64 = arith.mulf %60, %63 : vector<8x128xf32>
      %65 = vector.broadcast %52 : vector<1x128xf32> to vector<8x128xf32>
      %66 = arith.mulf %65, %56 : vector<8x128xf32>
      %67 = arith.mulf %66, %64 : vector<8x128xf32>
      %68 = arith.addf %48, %67 : vector<8x128xf32>
      %c2_i32 = arith.constant 2 : i32
      %69 = arith.index_cast %c2_i32 : i32 to index
      %c0_34 = arith.constant 0 : index
      %70 = vector.load %arg10[%69, %c0_34] : memref<8x128xf32, #tpu.memory_space<vmem>>, vector<1x128xf32>
      %71 = arith.index_cast %c2_i32 : i32 to index
      %c0_35 = arith.constant 0 : index
      %72 = vector.load %arg11[%71, %c0_35] : memref<8x128xf32, #tpu.memory_space<vmem>>, vector<1x128xf32>
      %73 = arith.index_cast %c2_i32 : i32 to index
      %c0_36 = arith.constant 0 : index
      %74 = vector.load %arg12[%73, %c0_36] : memref<8x128xf32, #tpu.memory_space<vmem>>, vector<1x128xf32>
      %75 = vector.broadcast %70 : vector<1x128xf32> to vector<8x128xf32>
      %76 = arith.subf %27, %75 : vector<8x128xf32>
      %77 = arith.mulf %76, %76 : vector<8x128xf32>
      %78 = vector.broadcast %74 : vector<1x128xf32> to vector<8x128xf32>
      %79 = arith.addf %78, %77 : vector<8x128xf32>
      %80 = tpu.reciprocal %79 {approx = true} : vector<8x128xf32> -> vector<8x128xf32>
      %81 = arith.mulf %79, %80 : vector<8x128xf32>
      %cst_37 = arith.constant 2.000000e+00 : f32
      %82 = vector.broadcast %cst_37 : f32 to vector<8x128xf32>
      %83 = arith.subf %82, %81 : vector<8x128xf32>
      %84 = arith.mulf %80, %83 : vector<8x128xf32>
      %85 = vector.broadcast %72 : vector<1x128xf32> to vector<8x128xf32>
      %86 = arith.mulf %85, %76 : vector<8x128xf32>
      %87 = arith.mulf %86, %84 : vector<8x128xf32>
      %88 = arith.addf %68, %87 : vector<8x128xf32>
      %c3_i32 = arith.constant 3 : i32
      %89 = arith.index_cast %c3_i32 : i32 to index
      %c0_38 = arith.constant 0 : index
      %90 = vector.load %arg10[%89, %c0_38] : memref<8x128xf32, #tpu.memory_space<vmem>>, vector<1x128xf32>
      %91 = arith.index_cast %c3_i32 : i32 to index
      %c0_39 = arith.constant 0 : index
      %92 = vector.load %arg11[%91, %c0_39] : memref<8x128xf32, #tpu.memory_space<vmem>>, vector<1x128xf32>
      %93 = arith.index_cast %c3_i32 : i32 to index
      %c0_40 = arith.constant 0 : index
      %94 = vector.load %arg12[%93, %c0_40] : memref<8x128xf32, #tpu.memory_space<vmem>>, vector<1x128xf32>
      %95 = vector.broadcast %90 : vector<1x128xf32> to vector<8x128xf32>
      %96 = arith.subf %27, %95 : vector<8x128xf32>
      %97 = arith.mulf %96, %96 : vector<8x128xf32>
      %98 = vector.broadcast %94 : vector<1x128xf32> to vector<8x128xf32>
      %99 = arith.addf %98, %97 : vector<8x128xf32>
      %100 = tpu.reciprocal %99 {approx = true} : vector<8x128xf32> -> vector<8x128xf32>
      %101 = arith.mulf %99, %100 : vector<8x128xf32>
      %cst_41 = arith.constant 2.000000e+00 : f32
      %102 = vector.broadcast %cst_41 : f32 to vector<8x128xf32>
      %103 = arith.subf %102, %101 : vector<8x128xf32>
      %104 = arith.mulf %100, %103 : vector<8x128xf32>
      %105 = vector.broadcast %92 : vector<1x128xf32> to vector<8x128xf32>
      %106 = arith.mulf %105, %96 : vector<8x128xf32>
      %107 = arith.mulf %106, %104 : vector<8x128xf32>
      %108 = arith.addf %88, %107 : vector<8x128xf32>
      %c4_i32 = arith.constant 4 : i32
      %109 = arith.index_cast %c4_i32 : i32 to index
      %c0_42 = arith.constant 0 : index
      %110 = vector.load %arg10[%109, %c0_42] : memref<8x128xf32, #tpu.memory_space<vmem>>, vector<1x128xf32>
      %111 = arith.index_cast %c4_i32 : i32 to index
      %c0_43 = arith.constant 0 : index
      %112 = vector.load %arg11[%111, %c0_43] : memref<8x128xf32, #tpu.memory_space<vmem>>, vector<1x128xf32>
      %113 = arith.index_cast %c4_i32 : i32 to index
      %c0_44 = arith.constant 0 : index
      %114 = vector.load %arg12[%113, %c0_44] : memref<8x128xf32, #tpu.memory_space<vmem>>, vector<1x128xf32>
      %115 = vector.broadcast %110 : vector<1x128xf32> to vector<8x128xf32>
      %116 = arith.subf %27, %115 : vector<8x128xf32>
      %117 = arith.mulf %116, %116 : vector<8x128xf32>
      %118 = vector.broadcast %114 : vector<1x128xf32> to vector<8x128xf32>
      %119 = arith.addf %118, %117 : vector<8x128xf32>
      %120 = tpu.reciprocal %119 {approx = true} : vector<8x128xf32> -> vector<8x128xf32>
      %121 = arith.mulf %119, %120 : vector<8x128xf32>
      %cst_45 = arith.constant 2.000000e+00 : f32
      %122 = vector.broadcast %cst_45 : f32 to vector<8x128xf32>
      %123 = arith.subf %122, %121 : vector<8x128xf32>
      %124 = arith.mulf %120, %123 : vector<8x128xf32>
      %125 = vector.broadcast %112 : vector<1x128xf32> to vector<8x128xf32>
      %126 = arith.mulf %125, %116 : vector<8x128xf32>
      %127 = arith.mulf %126, %124 : vector<8x128xf32>
      %128 = arith.addf %108, %127 : vector<8x128xf32>
      %c5_i32 = arith.constant 5 : i32
      %129 = arith.index_cast %c5_i32 : i32 to index
      %c0_46 = arith.constant 0 : index
      %130 = vector.load %arg10[%129, %c0_46] : memref<8x128xf32, #tpu.memory_space<vmem>>, vector<1x128xf32>
      %131 = arith.index_cast %c5_i32 : i32 to index
      %c0_47 = arith.constant 0 : index
      %132 = vector.load %arg11[%131, %c0_47] : memref<8x128xf32, #tpu.memory_space<vmem>>, vector<1x128xf32>
      %133 = arith.index_cast %c5_i32 : i32 to index
      %c0_48 = arith.constant 0 : index
      %134 = vector.load %arg12[%133, %c0_48] : memref<8x128xf32, #tpu.memory_space<vmem>>, vector<1x128xf32>
      %135 = vector.broadcast %130 : vector<1x128xf32> to vector<8x128xf32>
      %136 = arith.subf %27, %135 : vector<8x128xf32>
      %137 = arith.mulf %136, %136 : vector<8x128xf32>
      %138 = vector.broadcast %134 : vector<1x128xf32> to vector<8x128xf32>
      %139 = arith.addf %138, %137 : vector<8x128xf32>
      %140 = tpu.reciprocal %139 {approx = true} : vector<8x128xf32> -> vector<8x128xf32>
      %141 = arith.mulf %139, %140 : vector<8x128xf32>
      %cst_49 = arith.constant 2.000000e+00 : f32
      %142 = vector.broadcast %cst_49 : f32 to vector<8x128xf32>
      %143 = arith.subf %142, %141 : vector<8x128xf32>
      %144 = arith.mulf %140, %143 : vector<8x128xf32>
      %145 = vector.broadcast %132 : vector<1x128xf32> to vector<8x128xf32>
      %146 = arith.mulf %145, %136 : vector<8x128xf32>
      %147 = arith.mulf %146, %144 : vector<8x128xf32>
      %148 = arith.addf %128, %147 : vector<8x128xf32>
      %c6_i32 = arith.constant 6 : i32
      %149 = arith.index_cast %c6_i32 : i32 to index
      %c0_50 = arith.constant 0 : index
      %150 = vector.load %arg10[%149, %c0_50] : memref<8x128xf32, #tpu.memory_space<vmem>>, vector<1x128xf32>
      %151 = arith.index_cast %c6_i32 : i32 to index
      %c0_51 = arith.constant 0 : index
      %152 = vector.load %arg11[%151, %c0_51] : memref<8x128xf32, #tpu.memory_space<vmem>>, vector<1x128xf32>
      %153 = arith.index_cast %c6_i32 : i32 to index
      %c0_52 = arith.constant 0 : index
      %154 = vector.load %arg12[%153, %c0_52] : memref<8x128xf32, #tpu.memory_space<vmem>>, vector<1x128xf32>
      %155 = vector.broadcast %150 : vector<1x128xf32> to vector<8x128xf32>
      %156 = arith.subf %27, %155 : vector<8x128xf32>
      %157 = arith.mulf %156, %156 : vector<8x128xf32>
      %158 = vector.broadcast %154 : vector<1x128xf32> to vector<8x128xf32>
      %159 = arith.addf %158, %157 : vector<8x128xf32>
      %160 = tpu.reciprocal %159 {approx = true} : vector<8x128xf32> -> vector<8x128xf32>
      %161 = arith.mulf %159, %160 : vector<8x128xf32>
      %cst_53 = arith.constant 2.000000e+00 : f32
      %162 = vector.broadcast %cst_53 : f32 to vector<8x128xf32>
      %163 = arith.subf %162, %161 : vector<8x128xf32>
      %164 = arith.mulf %160, %163 : vector<8x128xf32>
      %165 = vector.broadcast %152 : vector<1x128xf32> to vector<8x128xf32>
      %166 = arith.mulf %165, %156 : vector<8x128xf32>
      %167 = arith.mulf %166, %164 : vector<8x128xf32>
      %168 = arith.addf %148, %167 : vector<8x128xf32>
      %c7_i32 = arith.constant 7 : i32
      %169 = arith.index_cast %c7_i32 : i32 to index
      %c0_54 = arith.constant 0 : index
      %170 = vector.load %arg10[%169, %c0_54] : memref<8x128xf32, #tpu.memory_space<vmem>>, vector<1x128xf32>
      %171 = arith.index_cast %c7_i32 : i32 to index
      %c0_55 = arith.constant 0 : index
      %172 = vector.load %arg11[%171, %c0_55] : memref<8x128xf32, #tpu.memory_space<vmem>>, vector<1x128xf32>
      %173 = arith.index_cast %c7_i32 : i32 to index
      %c0_56 = arith.constant 0 : index
      %174 = vector.load %arg12[%173, %c0_56] : memref<8x128xf32, #tpu.memory_space<vmem>>, vector<1x128xf32>
      %175 = vector.broadcast %170 : vector<1x128xf32> to vector<8x128xf32>
      %176 = arith.subf %27, %175 : vector<8x128xf32>
      %177 = arith.mulf %176, %176 : vector<8x128xf32>
      %178 = vector.broadcast %174 : vector<1x128xf32> to vector<8x128xf32>
      %179 = arith.addf %178, %177 : vector<8x128xf32>
      %180 = tpu.reciprocal %179 {approx = true} : vector<8x128xf32> -> vector<8x128xf32>
      %181 = arith.mulf %179, %180 : vector<8x128xf32>
      %cst_57 = arith.constant 2.000000e+00 : f32
      %182 = vector.broadcast %cst_57 : f32 to vector<8x128xf32>
      %183 = arith.subf %182, %181 : vector<8x128xf32>
      %184 = arith.mulf %180, %183 : vector<8x128xf32>
      %185 = vector.broadcast %172 : vector<1x128xf32> to vector<8x128xf32>
      %186 = arith.mulf %185, %176 : vector<8x128xf32>
      %187 = arith.mulf %186, %184 : vector<8x128xf32>
      %188 = arith.addf %168, %187 : vector<8x128xf32>
      %c8_i32 = arith.constant 8 : i32
      %c0_58 = arith.constant 0 : index
      %c0_59 = arith.constant 0 : index
      %189 = vector.load %arg9[%c0_58, %c0_59] : memref<8x128xf32, #tpu.memory_space<vmem>>, vector<8x128xf32>
      tpu.vector_store %arg9[%c0_58, %c0_59], %188 {strides = array<i32>} : memref<8x128xf32, #tpu.memory_space<vmem>>, vector<8x128xf32>,
    } else {
    }
    %c0 = arith.constant 0 : index
    %c0_1 = arith.constant 0 : index
    %3 = vector.load %arg3[%c0, %c0_1] : memref<8x8xf32, #tpu.memory_space<vmem>>, vector<8x8xf32>
    %c0_2 = arith.constant 0 : index
    %c0_3 = arith.constant 0 : index
    %4 = vector.load %arg9[%c0_2, %c0_3] : memref<8x128xf32, #tpu.memory_space<vmem>>, vector<8x128xf32>
    %cst = arith.constant dense<0.000000e+00> : vector<8x128xf32>
    %5 = tpu.matmul %3, %4, %cst {dimension_numbers = #tpu.dot_dimension_numbers<[1], [0], [0], [1], [0, 0, 1, 1], [], []>} : vector<8x8xf32>, vector<8x128xf32>, vector<8x128xf32> -> vector<8x128xf32>
    %c0_4 = arith.constant 0 : index
    %c0_5 = arith.constant 0 : index
    %6 = vector.load %arg7[%c0_4, %c0_5] : memref<1x128xf32, #tpu.memory_space<vmem>>, vector<1x128xf32>
    %7 = vector.broadcast %6 : vector<1x128xf32> to vector<8x128xf32>
    %8 = arith.addf %5, %7 : vector<8x128xf32>
    %c0_6 = arith.constant 0 : index
    %c0_7 = arith.constant 0 : index
    %9 = vector.load %arg8[%c0_6, %c0_7] : memref<8x128xf32, #tpu.memory_space<vmem>>, vector<8x128xf32>
    tpu.vector_store %arg8[%c0_6, %c0_7], %8 {strides = array<i32>} : memref<8x128xf32, #tpu.memory_space<vmem>>, vector<8x128xf32>,
    return
  }
  func.func @transform_0(%arg0: i32, %arg1: i32) -> (i32, i32) {
    %c0_i32 = arith.constant 0 : i32
    %c0_i32_0 = arith.constant 0 : i32
    %c0_i32_1 = arith.constant 0 : i32
    return %c0_i32, %c0_i32_0 : i32, i32
  }
  func.func @transform_1(%arg0: i32, %arg1: i32) -> (i32, i32) {
    %c0_i32 = arith.constant 0 : i32
    %c0_i32_0 = arith.constant 0 : i32
    return %arg1, %c0_i32 : i32, i32
  }
  func.func @transform_2(%arg0: i32, %arg1: i32) -> (i32, i32) {
    %c0_i32 = arith.constant 0 : i32
    %c0_i32_0 = arith.constant 0 : i32
    %c0_i32_1 = arith.constant 0 : i32
    return %c0_i32, %c0_i32_0 : i32, i32
  }
  func.func @transform_3(%arg0: i32, %arg1: i32) -> (i32, i32) {
    %c0_i32 = arith.constant 0 : i32
    %c0_i32_0 = arith.constant 0 : i32
    return %c0_i32, %arg0 : i32, i32
  }
  func.func @transform_4(%arg0: i32, %arg1: i32) -> (i32, i32) {
    %c0_i32 = arith.constant 0 : i32
    %c0_i32_0 = arith.constant 0 : i32
    %c0_i32_1 = arith.constant 0 : i32
    return %c0_i32, %c0_i32_0 : i32, i32
  }
  func.func @transform_5(%arg0: i32, %arg1: i32) -> (i32, i32) {
    %c0_i32 = arith.constant 0 : i32
    %c0_i32_0 = arith.constant 0 : i32
    return %c0_i32, %arg0 : i32, i32
  }
  func.func @transform_6(%arg0: i32, %arg1: i32) -> (i32, i32) {
    %c0_i32 = arith.constant 0 : i32
    return %arg1, %arg0 : i32, i32
  }
}

</mosaic_0001>

<llo_original>
// kernel: tpu_custom_call.1
$region0: #{tpu_custom_call.1}
  #allocation0 [shape = 'u32[]', space=smem, size = 0x4, offset = 0x4, fixed_abs, tag = 'smem constant byte address 0x4 - core index']
  #allocation1 [shape = 'u32[144,128]{1,0:T(1,128)}', space=vmem, size = 0x12000, scoped, tag = 'internal scratch']
  #allocation2 [shape = 'f32[8,128]{1,0:T(8,128)}', space=vmem, size = 0x1000, scoped, tag = 'scratch operand']
  #allocation3 [shape = 'f32[8,128]{1,0:T(8,128)}', space=vmem, size = 0x1000, scoped, tag = 'scratch operand']
  #allocation4 [shape = 'f32[8,128]{1,0:T(8,128)}', space=vmem, size = 0x1000, scoped, tag = 'scratch operand']
  #allocation5 [shape = 'f32[8,128]{1,0:T(8,128)}', space=vmem, size = 0x1000, scoped, tag = 'scratch operand']
  %s0 = inlined_call_operand.vmem [shape: f32[8,1], index: 0, kind: input, shape index: {}]
  %s1 = inlined_call_operand.vmem [shape: f32[8,8], index: 1, kind: input, shape index: {}]
  %s2 = inlined_call_operand.vmem [shape: f32[8,1], index: 2, kind: input, shape index: {}]
  %s3 = inlined_call_operand.vmem [shape: f32[8,128], index: 3, kind: input, shape index: {}]
  %s4 = inlined_call_operand.vmem [shape: f32[8,1], index: 4, kind: input, shape index: {}]
  %s5 = inlined_call_operand.vmem [shape: f32[1,128], index: 5, kind: input, shape index: {}]
  %s6 = inlined_call_operand.hbm [shape: f32[8,128], index: 6, kind: output, shape index: {}]
  %s7 = sld [smem:[#allocation0]]
  $region38: #{tpu_custom_call.1} parent=0
    _
  %s9 = ssub.s32 1, %s7
  %s10 = scalar_select 0, %s9, %s7
  $region1: #{tpu_custom_call.1} parent=0
    #allocation6 [shape = 'u8[4096]{0}', space=vmem, size = 0x1000, scoped, tag = 'output window, operand 0, single buffered']
    #allocation7 [shape = 's32[1]{0}', space=sflag, size = 0x4, scoped, tag = 'scoped memory for tpu_custom_call.1']
    %11 = vsyncpa [#allocation7], 0
    // Predicated region
    $region2: #{tpu_custom_call.1} parent=1 // pred_check
      _
    $region3: #{tpu_custom_call.1} parent=1 // pred_check_branch
      %13 = sbr.rel (0) target = $region5
    $region4: #{tpu_custom_call.1} parent=1 // pred_region
      _
    $region5: #{tpu_custom_call.1} parent=1 // pred_fallthru
      _
    // Predicated region
    $region6: #{tpu_custom_call.1} parent=1 // pred_check
      _
    $region7: #{tpu_custom_call.1} parent=1 // pred_check_branch
      %15 = sbr.rel (0) target = $region9
    $region8: #{tpu_custom_call.1} parent=1 // pred_region
      _
    $region9: #{tpu_custom_call.1} parent=1 // pred_fallthru
      _
    // Predicated region
    $region10: #{tpu_custom_call.1} parent=1 // pred_check
      _
    $region11: #{tpu_custom_call.1} parent=1 // pred_check_branch
      %17 = sbr.rel (0) target = $region13
    $region12: #{tpu_custom_call.1} parent=1 // pred_region
      _
    $region13: #{tpu_custom_call.1} parent=1 // pred_fallthru
      _
    // Predicated region
    $region14: #{tpu_custom_call.1} parent=1 // pred_check
      _
    $region15: #{tpu_custom_call.1} parent=1 // pred_check_branch
      %19 = sbr.rel (0) target = $region17
    $region16: #{tpu_custom_call.1} parent=1 // pred_region
      _
    $region17: #{tpu_custom_call.1} parent=1 // pred_fallthru
      _
    // Predicated region
    $region18: #{tpu_custom_call.1} parent=1 // pred_check
      _
    $region19: #{tpu_custom_call.1} parent=1 // pred_check_branch
      %21 = sbr.rel (0) target = $region21
    $region20: #{tpu_custom_call.1} parent=1 // pred_region
      _
    $region21: #{tpu_custom_call.1} parent=1 // pred_fallthru
      _
    // Predicated region
    $region22: #{tpu_custom_call.1} parent=1 // pred_check
      _
    $region23: #{tpu_custom_call.1} parent=1 // pred_check_branch
      %23 = sbr.rel (0) target = $region25
    $region24: #{tpu_custom_call.1} parent=1 // pred_region
      _
    $region25: #{tpu_custom_call.1} parent=1 // pred_fallthru
      _
    %p24 = scmp.eq.s32.totalorder 0, 0
    // Predicated region
    $region26: #{tpu_custom_call.1} parent=1 // pred_check
      %p25 = pneg %p24
    $region27: #{tpu_custom_call.1} parent=1 // pred_check_branch
      %27 = sbr.rel (%p25) target = $region29
    $region28: #{tpu_custom_call.1} parent=1 // pred_region
      %v28 = vld [vmem:[%s2] sm:$0xff]
      %v29 = vld [vmem:[%s3] sm:$0xff]
      %31 = vset.pattern.permute.xlu0 0
      %32 = vperm.xlu0 %31, %v28
      %v33 = vpop.permute.xlu0 %32
      %v35 = vadd.f32 %v33, %v29
      %36 = vst [vmem:[#allocation3] sm:$0xff] %v35
      %v37 = vmul.f32 %v35, 0.0001767767
      %v38 = vld [vmem:[%s4] sm:$0xff]
      %40 = vset.pattern.permute.xlu0 0
      %41 = vperm.xlu0 %40, %v38
      %v42 = vpop.permute.xlu0 %41
      %v44 = vmul.f32 %v37, %v42
      %45 = vst [vmem:[#allocation4] sm:$0xff] %v44
      %v46 = vmul.f32 %v35, 0.01
      %v47 = vmul.f32 %v46, %v46
      %48 = vst [vmem:[#allocation5] sm:$0xff] %v47
      %v49 = vld [vmem:[%s0] sm:$0xff]
      %51 = vset.pattern.permute.xlu0 0
      %52 = vperm.xlu0 %51, %v49
      %v53 = vpop.permute.xlu0 %52
      %v55 = vld [vmem:[#allocation3] sm:$0x1]
      %v56 = vld [vmem:[#allocation4] sm:$0x1]
      %v57 = vld [vmem:[#allocation5] sm:$0x1]
      %v58 = vlaneseq
      %v59 = vshrl.u32 %v58, 7
      %v60 = vsub.s32 0, %v59
      %v61 = vrot.slane %v55, %v60
      %v62 = vsub.f32 %v53, %v61
      %v63 = vmul.f32 %v62, %v62
      %v64 = vlaneseq
      %v65 = vshrl.u32 %v64, 7
      %v66 = vsub.s32 0, %v65
      %v67 = vrot.slane %v57, %v66
      %v68 = vadd.f32 %v67, %v63
      %v69 = vrcp.pop %v68
      %v70 = vmul.f32 %v68, %v69
      %v71 = vsub.f32 2.0, %v70
      %v72 = vmul.f32 %v69, %v71
      %v73 = vlaneseq
      %v74 = vshrl.u32 %v73, 7
      %v75 = vsub.s32 0, %v74
      %v76 = vrot.slane %v56, %v75
      %v77 = vmul.f32 %v76, %v62
      %v78 = vmul.f32 %v77, %v72
      %v79 = vadd.f32 %v78, 0.0
      %v80 = vld [vmem:[#allocation3 + $0x1] sm:$0x1]
      %v81 = vld [vmem:[#allocation4 + $0x1] sm:$0x1]
      %v82 = vld [vmem:[#allocation5 + $0x1] sm:$0x1]
      %v83 = vlaneseq
      %v84 = vshrl.u32 %v83, 7
      %v85 = vsub.s32 0, %v84
      %v86 = vrot.slane %v80, %v85
      %v87 = vsub.f32 %v53, %v86
      %v88 = vmul.f32 %v87, %v87
      %v89 = vlaneseq
      %v90 = vshrl.u32 %v89, 7
      %v91 = vsub.s32 0, %v90
      %v92 = vrot.slane %v82, %v91
      %v93 = vadd.f32 %v92, %v88
      %v94 = vrcp.pop %v93
      %v95 = vmul.f32 %v93, %v94
      %v96 = vsub.f32 2.0, %v95
      %v97 = vmul.f32 %v94, %v96
      %v98 = vlaneseq
      %v99 = vshrl.u32 %v98, 7
      %v100 = vsub.s32 0, %v99
      %v101 = vrot.slane %v81, %v100
      %v102 = vmul.f32 %v101, %v87
      %v103 = vmul.f32 %v102, %v97
      %v104 = vadd.f32 %v79, %v103
      %v105 = vld [vmem:[#allocation3 + $0x2] sm:$0x1]
      %v106 = vld [vmem:[#allocation4 + $0x2] sm:$0x1]
      %v107 = vld [vmem:[#allocation5 + $0x2] sm:$0x1]
      %v108 = vlaneseq
      %v109 = vshrl.u32 %v108, 7
      %v110 = vsub.s32 0, %v109
      %v111 = vrot.slane %v105, %v110
      %v112 = vsub.f32 %v53, %v111
      %v113 = vmul.f32 %v112, %v112
      %v114 = vlaneseq
      %v115 = vshrl.u32 %v114, 7
      %v116 = vsub.s32 0, %v115
      %v117 = vrot.slane %v107, %v116
      %v118 = vadd.f32 %v117, %v113
      %v119 = vrcp.pop %v118
      %v120 = vmul.f32 %v118, %v119
      %v121 = vsub.f32 2.0, %v120
      %v122 = vmul.f32 %v119, %v121
      %v123 = vlaneseq
      %v124 = vshrl.u32 %v123, 7
      %v125 = vsub.s32 0, %v124
      %v126 = vrot.slane %v106, %v125
      %v127 = vmul.f32 %v126, %v112
      %v128 = vmul.f32 %v127, %v122
      %v129 = vadd.f32 %v104, %v128
      %v130 = vld [vmem:[#allocation3 + $0x3] sm:$0x1]
      %v131 = vld [vmem:[#allocation4 + $0x3] sm:$0x1]
      %v132 = vld [vmem:[#allocation5 + $0x3] sm:$0x1]
      %v133 = vlaneseq
      %v134 = vshrl.u32 %v133, 7
      %v135 = vsub.s32 0, %v134
      %v136 = vrot.slane %v130, %v135
      %v137 = vsub.f32 %v53, %v136
      %v138 = vmul.f32 %v137, %v137
      %v139 = vlaneseq
      %v140 = vshrl.u32 %v139, 7
      %v141 = vsub.s32 0, %v140
      %v142 = vrot.slane %v132, %v141
      %v143 = vadd.f32 %v142, %v138
      %v144 = vrcp.pop %v143
      %v145 = vmul.f32 %v143, %v144
      %v146 = vsub.f32 2.0, %v145
      %v147 = vmul.f32 %v144, %v146
      %v148 = vlaneseq
      %v149 = vshrl.u32 %v148, 7
      %v150 = vsub.s32 0, %v149
      %v151 = vrot.slane %v131, %v150
      %v152 = vmul.f32 %v151, %v137
      %v153 = vmul.f32 %v152, %v147
      %v154 = vadd.f32 %v129, %v153
      %v155 = vld [vmem:[#allocation3 + $0x4] sm:$0x1]
      %v156 = vld [vmem:[#allocation4 + $0x4] sm:$0x1]
      %v157 = vld [vmem:[#allocation5 + $0x4] sm:$0x1]
      %v158 = vlaneseq
      %v159 = vshrl.u32 %v158, 7
      %v160 = vsub.s32 0, %v159
      %v161 = vrot.slane %v155, %v160
      %v162 = vsub.f32 %v53, %v161
      %v163 = vmul.f32 %v162, %v162
      %v164 = vlaneseq
      %v165 = vshrl.u32 %v164, 7
      %v166 = vsub.s32 0, %v165
      %v167 = vrot.slane %v157, %v166
      %v168 = vadd.f32 %v167, %v163
      %v169 = vrcp.pop %v168
      %v170 = vmul.f32 %v168, %v169
      %v171 = vsub.f32 2.0, %v170
      %v172 = vmul.f32 %v169, %v171
      %v173 = vlaneseq
      %v174 = vshrl.u32 %v173, 7
      %v175 = vsub.s32 0, %v174
      %v176 = vrot.slane %v156, %v175
      %v177 = vmul.f32 %v176, %v162
      %v178 = vmul.f32 %v177, %v172
      %v179 = vadd.f32 %v154, %v178
      %v180 = vld [vmem:[#allocation3 + $0x5] sm:$0x1]
      %v181 = vld [vmem:[#allocation4 + $0x5] sm:$0x1]
      %v182 = vld [vmem:[#allocation5 + $0x5] sm:$0x1]
      %v183 = vlaneseq
      %v184 = vshrl.u32 %v183, 7
      %v185 = vsub.s32 0, %v184
      %v186 = vrot.slane %v180, %v185
      %v187 = vsub.f32 %v53, %v186
      %v188 = vmul.f32 %v187, %v187
      %v189 = vlaneseq
      %v190 = vshrl.u32 %v189, 7
      %v191 = vsub.s32 0, %v190
      %v192 = vrot.slane %v182, %v191
      %v193 = vadd.f32 %v192, %v188
      %v194 = vrcp.pop %v193
      %v195 = vmul.f32 %v193, %v194
      %v196 = vsub.f32 2.0, %v195
      %v197 = vmul.f32 %v194, %v196
      %v198 = vlaneseq
      %v199 = vshrl.u32 %v198, 7
      %v200 = vsub.s32 0, %v199
      %v201 = vrot.slane %v181, %v200
      %v202 = vmul.f32 %v201, %v187
      %v203 = vmul.f32 %v202, %v197
      %v204 = vadd.f32 %v179, %v203
      %v205 = vld [vmem:[#allocation3 + $0x6] sm:$0x1]
      %v206 = vld [vmem:[#allocation4 + $0x6] sm:$0x1]
      %v207 = vld [vmem:[#allocation5 + $0x6] sm:$0x1]
      %v208 = vlaneseq
      %v209 = vshrl.u32 %v208, 7
      %v210 = vsub.s32 0, %v209
      %v211 = vrot.slane %v205, %v210
      %v212 = vsub.f32 %v53, %v211
      %v213 = vmul.f32 %v212, %v212
      %v214 = vlaneseq
      %v215 = vshrl.u32 %v214, 7
      %v216 = vsub.s32 0, %v215
      %v217 = vrot.slane %v207, %v216
      %v218 = vadd.f32 %v217, %v213
      %v219 = vrcp.pop %v218
      %v220 = vmul.f32 %v218, %v219
      %v221 = vsub.f32 2.0, %v220
      %v222 = vmul.f32 %v219, %v221
      %v223 = vlaneseq
      %v224 = vshrl.u32 %v223, 7
      %v225 = vsub.s32 0, %v224
      %v226 = vrot.slane %v206, %v225
      %v227 = vmul.f32 %v226, %v212
      %v228 = vmul.f32 %v227, %v222
      %v229 = vadd.f32 %v204, %v228
      %v230 = vld [vmem:[#allocation3 + $0x7] sm:$0x1]
      %v231 = vld [vmem:[#allocation4 + $0x7] sm:$0x1]
      %v232 = vld [vmem:[#allocation5 + $0x7] sm:$0x1]
      %v233 = vlaneseq
      %v234 = vshrl.u32 %v233, 7
      %v235 = vsub.s32 0, %v234
      %v236 = vrot.slane %v230, %v235
      %v237 = vsub.f32 %v53, %v236
      %v238 = vmul.f32 %v237, %v237
      %v239 = vlaneseq
      %v240 = vshrl.u32 %v239, 7
      %v241 = vsub.s32 0, %v240
      %v242 = vrot.slane %v232, %v241
      %v243 = vadd.f32 %v242, %v238
      %v244 = vrcp.pop %v243
      %v245 = vmul.f32 %v243, %v244
      %v246 = vsub.f32 2.0, %v245
      %v247 = vmul.f32 %v244, %v246
      %v248 = vlaneseq
      %v249 = vshrl.u32 %v248, 7
      %v250 = vsub.s32 0, %v249
      %v251 = vrot.slane %v231, %v250
      %v252 = vmul.f32 %v251, %v237
      %v253 = vmul.f32 %v252, %v247
      %v254 = vadd.f32 %v229, %v253
      %255 = vst [vmem:[#allocation2] sm:$0xff] %v254
    $region29: #{tpu_custom_call.1} parent=1 // pred_fallthru
      _
    %v256 = vld [vmem:[%s1] sm:$0xff]
    %v257 = vld [vmem:[#allocation2] sm:$0xff]
    %v258 = vld [vmem:[%s5] sm:$0x1]
    %v260 = vlaneseq
    %v261 = vshrl.u32 %v260, 7
    %v262 = vsub.s32 0, %v261
    %v263 = vrot.slane %v258, %v262
    %vm265 = vcmask 64512
    %v267 = vsel %vm265, %v256, 0
    %269 = vmatprep.subr.mxu0 0.0
    %270 = vmatpush1.msra.mxu0 0.0
    %271 = vmatprep.subr.mxu0 0.0
    %272 = vmatpush1.msra.mxu0 0.0
    %273 = vmatprep.subr.mxu0 0.0
    %274 = vmatpush1.msra.mxu0 0.0
    %275 = vmatprep.subr.mxu0 0.0
    %276 = vmatpush1.msra.mxu0 0.0
    %277 = vmatprep.subr.mxu0 0.0
    %278 = vmatpush1.msra.mxu0 0.0
    %279 = vmatprep.subr.mxu0 0.0
    %280 = vmatpush1.msra.mxu0 0.0
    %281 = vmatprep.subr.mxu0 0.0
    %282 = vmatpush1.msra.mxu0 0.0
    %283 = vmatprep.subr.mxu0 0.0
    %284 = vmatpush1.msra.mxu0 0.0
    %285 = vmatprep.subr.mxu0 0.0
    %286 = vmatpush1.msra.mxu0 0.0
    %287 = vmatprep.subr.mxu0 0.0
    %288 = vmatpush1.msra.mxu0 0.0
    %289 = vmatprep.subr.mxu0 0.0
    %290 = vmatpush1.msra.mxu0 0.0
    %291 = vmatprep.subr.mxu0 0.0
    %292 = vmatpush1.msra.mxu0 0.0
    %293 = vmatprep.subr.mxu0 0.0
    %294 = vmatpush1.msra.mxu0 0.0
    %295 = vmatprep.subr.mxu0 0.0
    %296 = vmatpush1.msra.mxu0 0.0
    %297 = vmatprep.subr.mxu0 0.0
    %298 = vmatpush1.msra.mxu0 0.0
    %299 = vmatprep.subr.mxu0 0.0
    %300 = vmatpush1.msra.mxu0 %v257
    %301 = vmatprep.subr.mxu0 0.0
    %302 = vmatpush2.msra.mxu0 0.0
    %303 = vmatprep.subr.mxu0 0.0
    %304 = vmatpush2.msra.mxu0 0.0
    %305 = vmatprep.subr.mxu0 0.0
    %306 = vmatpush2.msra.mxu0 0.0
    %307 = vmatprep.subr.mxu0 0.0
    %308 = vmatpush2.msra.mxu0 0.0
    %309 = vmatprep.subr.mxu0 0.0
    %310 = vmatpush2.msra.mxu0 0.0
    %311 = vmatprep.subr.mxu0 0.0
    %312 = vmatpush2.msra.mxu0 0.0
    %313 = vmatprep.subr.mxu0 0.0
    %314 = vmatpush2.msra.mxu0 0.0
    %315 = vmatprep.subr.mxu0 0.0
    %316 = vmatpush2.msra.mxu0 0.0
    %317 = vmatprep.subr.mxu0 0.0
    %318 = vmatpush2.msra.mxu0 0.0
    %319 = vmatprep.subr.mxu0 0.0
    %320 = vmatpush2.msra.mxu0 0.0
    %321 = vmatprep.subr.mxu0 0.0
    %322 = vmatpush2.msra.mxu0 0.0
    %323 = vmatprep.subr.mxu0 0.0
    %324 = vmatpush2.msra.mxu0 0.0
    %325 = vmatprep.subr.mxu0 0.0
    %326 = vmatpush2.msra.mxu0 0.0
    %327 = vmatprep.subr.mxu0 0.0
    %328 = vmatpush2.msra.mxu0 0.0
    %329 = vmatprep.subr.mxu0 0.0
    %330 = vmatpush2.msra.mxu0 0.0
    %331 = vmatprep.subr.mxu0 0.0
    %332 = vmatpush2.msra.mxu0 0.0
    %333 = vmatprep.mubr.f32.mxu0 0.0
    %334 = vmatmul.mubr.f32.gmra.mxu0 %v267
    %v335 = vpop.f32.mrf.mxu0
    %v336 = vadd.f32 %v263, %v335
    %v337 = vpop.f32.mrf.mxu0
    %338 = vdwg.mxu0
    %339 = vst [vmem:[#allocation6] sm:$0xff] %v336
    // Predicated region
    $region30: #{tpu_custom_call.1} parent=1 // pred_check
      _
    $region31: #{tpu_custom_call.1} parent=1 // pred_check_branch
      %341 = sbr.rel (0) target = $region33
    $region32: #{tpu_custom_call.1} parent=1 // pred_region
      %s343 = ssub.s32 128, 128
      %344 = vsyncadd [#allocation7], %s343
      %s346 = sshll.u32 [#allocation6], 4
      %s347 = int_to_ptr.vmem [resolvable:$true] %s346
      %349 = dma.vmem_to_hbm [thread:$0]  %s347, 128, %s6, [#allocation7]
    $region33: #{tpu_custom_call.1} parent=1 // pred_fallthru
      _
    // Predicated region
    $region34: #{tpu_custom_call.1} parent=1 // pred_check
      _
    $region35: #{tpu_custom_call.1} parent=1 // pred_check_branch
      %351 = sbr.rel (0) target = $region37
    $region36: #{tpu_custom_call.1} parent=1 // pred_region
      %352 = dma.done [#allocation7], 128
    $region37: #{tpu_custom_call.1} parent=1 // pred_fallthru
      _
    %353 = vsyncpa [#allocation7], 1

</llo_original>
